<compile_context>
chip_gen: v6e
topology: v6e:2x2x1
jax: 0.10.0
libtpu: 0.0.40
codegen_flags: <defaults>
</compile_context>

<pallas_src>
import jax
import jax.numpy as jnp
from jax.experimental import pallas as pl
from jax.experimental.pallas import tpu as pltpu


# ---------------------------------------------------------------------------
# Chip-aware sizing helpers
# ---------------------------------------------------------------------------

def _chip_params():
    """Best-effort query of the local TPU generation / VMEM capacity."""
    vmem_bytes = 128 << 20
    kind = ""
    try:
        kind = jax.devices()[0].device_kind.lower()
    except Exception:
        pass
    try:
        info = pltpu.get_tpu_info()
        vmem_bytes = int(getattr(info, "vmem_capacity_bytes", vmem_bytes))
    except Exception:
        pass

    is_v7 = ("v7" in kind) or (vmem_bytes <= (80 << 20))
    is_v5e = ("v5 lite" in kind) or ("v5lite" in kind) or ("v5e" in kind)

    if is_v7:
        # 64 MiB physical per TC: leave headroom for compiler scratch, and ask
        # for >= 4 grid steps so both TensorCores get >= 2 steps each.
        budget = 44 << 20
        min_steps = 4
    else:
        # v5e / v6e: 1 TC, 128 MiB VMEM -> fattest tiles win for a mem-bound
        # kernel; no megacore-motivated grid split.
        budget = 56 << 20
        min_steps = 1

    return dict(vmem_bytes=vmem_bytes, is_v7=is_v7, is_v5e=is_v5e,
                budget=budget, min_steps=min_steps)


def _vmem_limit(working_set_bytes, chip):
    limit = working_set_bytes + (8 << 20)       # headroom for compiler scratch
    limit = max(limit, 32 << 20)
    limit = min(limit, int(chip["vmem_bytes"] * 0.9))
    return int(limit)


def _pick_b_tile(B, C, HWp, itemsize, budget, extra_f32, min_steps, weight_bytes):
    """Largest divisor of B whose working set fits the budget.

    Working set = 2x double-buffered input + 2x output + ~1 block of compute
    temps (+ one f32 block when the rescale has to upcast) + resident weights.
    Returns (bt, fits, working_set_bytes).
    """
    per_block = C * HWp * itemsize
    f32_block = C * HWp * 4 if extra_f32 else 0

    def working_set(bt):
        return bt * (5 * per_block + f32_block) + weight_bytes

    cap = max(1, B // min_steps) if min_steps > 1 else B
    best = 0
    for bt in range(1, B + 1):
        if B % bt == 0 and bt <= cap and working_set(bt) <= budget:
            best = bt
    if best == 0:
        return 1, False, working_set(1)
    return best, True, working_set(best)


def _pick_hw_tile(C, HWp, itemsize, budget, extra_f32, weight_bytes):
    """Largest lane-dense spatial tile (multiple of 128 dividing HWp) that fits."""
    n128 = HWp // 128
    best = 128
    for k in range(1, n128 + 1):
        if n128 % k != 0:
            continue
        hw_t = k * 128
        ws = 5 * C * hw_t * itemsize + (C * hw_t * 4 if extra_f32 else 0) + weight_bytes
        if ws <= budget:
            best = hw_t
    ws = 5 * C * best * itemsize + (C * best * 4 if extra_f32 else 0) + weight_bytes
    return best, ws


# ---------------------------------------------------------------------------
# Excitation (fc1 -> relu -> fc2 -> sigmoid), all in f32
# ---------------------------------------------------------------------------

def _excite(s, w1, b1, w2, b2, use_mxu):
    """s: (bt, C, 1) f32 squeeze.  Returns gate (bt, C, 1) f32, C on sublanes."""
    if use_mxu:
        # Production configs (large C, Cr): use the MXU for the FCs.
        s2 = s[:, :, 0]                                                    # (bt, C)
        h = jnp.maximum(
            jnp.dot(s2, w1, preferred_element_type=jnp.float32) + b1, 0.0)  # (bt, Cr)
        g2 = jax.lax.dot_general(h, w2, (((1,), (1,)), ((), ())),
                                 preferred_element_type=jnp.float32)        # (bt, C)
        g2 = g2 + b2[:, 0][None, :]
        return jax.nn.sigmoid(g2)[:, :, None]                               # (bt, C, 1)

    # Tiny C/Cr: broadcast-multiply + XLU reduce keeps C on sublanes throughout
    # (no relayout), and the gate comes out matching x's layout.
    h = jnp.sum(s * w1[None, :, :], axis=1, keepdims=True) + b1[None, :, :]  # (bt,1,Cr)
    h = jnp.maximum(h, 0.0)
    g = jnp.sum(h * w2[None, :, :], axis=2, keepdims=True) + b2[None, :, :]  # (bt,C,1)
    return jax.nn.sigmoid(g)


# ---------------------------------------------------------------------------
# Single-pass kernel (whole (bt, C, HWp) block resident in VMEM)
# ---------------------------------------------------------------------------

def _se_single_pass(x_flat, w1, b1, w2, b2, *, bt, inv_hw, scale_native,
                    use_mxu, vmem_limit):
    B, C, HWp = x_flat.shape
    Cr = w1.shape[1]

    def kernel(x_ref, w1_ref, b1_ref, w2_ref, b2_ref, o_ref):
        # Squeeze: f32-accumulated reduce over the lane (HW) axis.  x is NOT
        # bound as a full-block f32 temporary.
        s = jnp.sum(x_ref[...].astype(jnp.float32), axis=2, keepdims=True) * inv_hw
        g = _excite(s,
                    w1_ref[...].astype(jnp.float32), b1_ref[...].astype(jnp.float32),
                    w2_ref[...].astype(jnp.float32), b2_ref[...].astype(jnp.float32),
                    use_mxu)
        # Rescale: gate (bt, C, 1) broadcasts over lanes, no relayout.
        if scale_native:
            o_ref[...] = (x_ref[...] * g.astype(x_ref.dtype)).astype(o_ref.dtype)
        else:
            # v5e + bf16 input: no bf16 VALU, keep the multiply in f32.
            o_ref[...] = (x_ref[...].astype(jnp.float32) * g).astype(o_ref.dtype)

    return pl.pallas_call(
        kernel,
        out_shape=jax.ShapeDtypeStruct((B, C, HWp), x_flat.dtype),
        grid_spec=pltpu.PrefetchScalarGridSpec(
            num_scalar_prefetch=0,
            grid=(B // bt,),
            in_specs=[
                pl.BlockSpec((bt, C, HWp), lambda i: (i, 0, 0)),
                pl.BlockSpec((C, Cr), lambda i: (0, 0)),
                pl.BlockSpec((1, Cr), lambda i: (0, 0)),
                pl.BlockSpec((C, Cr), lambda i: (0, 0)),
                pl.BlockSpec((C, 1), lambda i: (0, 0)),
            ],
            out_specs=pl.BlockSpec((bt, C, HWp), lambda i: (i, 0, 0)),
        ),
        compiler_params=pltpu.CompilerParams(
            dimension_semantics=("parallel",),
            vmem_limit_bytes=vmem_limit,
        ),
    )(x_flat, w1, b1, w2, b2)


# ---------------------------------------------------------------------------
# Two-pass fallback (spatially tiled) for blocks too large for VMEM
# ---------------------------------------------------------------------------

def _se_two_pass(x_flat, w1, b1, w2, b2, *, hw_t, inv_hw, scale_native,
                 use_mxu, vmem_limit):
    B, C, HWp = x_flat.shape
    Cr = w1.shape[1]
    n_hw = HWp // hw_t

    # Pass 1: per-(batch, channel) gate.  HW is the (last) reduction grid axis;
    # the per-channel sum lives in a VMEM scratch accumulator.
    def gate_kernel(x_ref, w1_ref, b1_ref, w2_ref, b2_ref, g_ref, sum_sc):
        h_i = pl.program_id(1)

        @pl.when(h_i == 0)
        def _():
            sum_sc[...] = jnp.zeros_like(sum_sc)

        sum_sc[...] += jnp.sum(x_ref[...].astype(jnp.float32), axis=2, keepdims=True)

        @pl.when(h_i == pl.num_programs(1) - 1)
        def _():
            s = sum_sc[...] * inv_hw        # mean over the FULL spatial extent
            g = _excite(s,
                        w1_ref[...].astype(jnp.float32), b1_ref[...].astype(jnp.float32),
                        w2_ref[...].astype(jnp.float32), b2_ref[...].astype(jnp.float32),
                        use_mxu)
            g_ref[...] = g

    gate = pl.pallas_call(
        gate_kernel,
        out_shape=jax.ShapeDtypeStruct((B, C, 1), jnp.float32),
        grid_spec=pltpu.PrefetchScalarGridSpec(
            num_scalar_prefetch=0,
            grid=(B, n_hw),
            in_specs=[
                pl.BlockSpec((1, C, hw_t), lambda b, h: (b, 0, h)),
                pl.BlockSpec((C, Cr), lambda b, h: (0, 0)),
                pl.BlockSpec((1, Cr), lambda b, h: (0, 0)),
                pl.BlockSpec((C, Cr), lambda b, h: (0, 0)),
                pl.BlockSpec((C, 1), lambda b, h: (0, 0)),
            ],
            out_specs=pl.BlockSpec((1, C, 1), lambda b, h: (b, 0, 0)),
            scratch_shapes=[pltpu.VMEM((1, C, 1), jnp.float32)],
        ),
        compiler_params=pltpu.CompilerParams(
            dimension_semantics=("parallel", "arbitrary"),
            vmem_limit_bytes=vmem_limit,
        ),
    )(x_flat, w1, b1, w2, b2)

    # Pass 2: rescale x by the gate, spatially tiled (both axes independent).
    def scale_kernel(x_ref, g_ref, o_ref):
        g = g_ref[...]
        if scale_native:
            o_ref[...] = (x_ref[...] * g.astype(x_ref.dtype)).astype(o_ref.dtype)
        else:
            o_ref[...] = (x_ref[...].astype(jnp.float32) * g).astype(o_ref.dtype)

    return pl.pallas_call(
        scale_kernel,
        out_shape=jax.ShapeDtypeStruct((B, C, HWp), x_flat.dtype),
        grid_spec=pltpu.PrefetchScalarGridSpec(
            num_scalar_prefetch=0,
            grid=(B, n_hw),
            in_specs=[
                pl.BlockSpec((1, C, hw_t), lambda b, h: (b, 0, h)),
                pl.BlockSpec((1, C, 1), lambda b, h: (b, 0, 0)),
            ],
            out_specs=pl.BlockSpec((1, C, hw_t), lambda b, h: (b, 0, h)),
        ),
        compiler_params=pltpu.CompilerParams(
            dimension_semantics=("parallel", "parallel"),
            vmem_limit_bytes=vmem_limit,
        ),
    )(x_flat, gate)


# ---------------------------------------------------------------------------
# Public wrapper
# ---------------------------------------------------------------------------

def se_layer(x, w1, b1, w2, b2, *, max_working_set_bytes=None):
    """SE layer forward.

    x:  (B, C, H, W)
    w1: (C, Cr)  == fc1.weight.T      b1: (1, Cr)  == fc1.bias[None, :]
    w2: (C, Cr)  == fc2.weight        b2: (C, 1)   == fc2.bias[:, None]
    """
    B, C, H, W = x.shape
    HW = H * W
    Cr = w1.shape[1]

    # Lane-dense layout: C on sublanes, HW on lanes, padded to a multiple of
    # 128 so stores are full-width (mean divides by the true HW, so the zero
    # padding does not change the result).
    HWp = ((HW + 127) // 128) * 128
    x_flat = x.reshape(B, C, HW)
    if HWp != HW:
        x_flat = jnp.pad(x_flat, ((0, 0), (0, 0), (0, HWp - HW)))
    inv_hw = 1.0 / HW

    chip = _chip_params()
    # Multiply in the input's native dtype unless it is a sub-f32 dtype on v5e
    # (no bf16 VALU there -> casts would be inserted anyway).
    scale_native = (x.dtype == jnp.float32) or (not chip["is_v5e"])
    use_mxu = (C >= 256) and (Cr >= 64)
    budget = chip["budget"] if max_working_set_bytes is None else max_working_set_bytes

    itemsize = x.dtype.itemsize
    weight_bytes = (2 * C * Cr + Cr + C) * 4

    bt, fits, ws = _pick_b_tile(B, C, HWp, itemsize, budget,
                                not scale_native, chip["min_steps"], weight_bytes)

    if fits:
        out_flat = _se_single_pass(
            x_flat, w1, b1, w2, b2,
            bt=bt, inv_hw=inv_hw, scale_native=scale_native, use_mxu=use_mxu,
            vmem_limit=_vmem_limit(ws, chip))
    else:
        hw_t, ws2 = _pick_hw_tile(C, HWp, itemsize, budget,
                                  not scale_native, weight_bytes)
        out_flat = _se_two_pass(
            x_flat, w1, b1, w2, b2,
            hw_t=hw_t, inv_hw=inv_hw, scale_native=scale_native, use_mxu=use_mxu,
            vmem_limit=_vmem_limit(ws2, chip))

    if HWp != HW:
        out_flat = out_flat[:, :, :HW]
    return out_flat.reshape(B, C, H, W)


def se_layer_ref(x, w1, b1, w2, b2):
    # Pure-JAX reference mirroring the PyTorch forward (same param layout).
    B, C, H, W = x.shape
    s = x.reshape(B, C, -1).mean(axis=2)                      # (B, C)
    h = jnp.maximum(s @ w1 + b1[0], 0.0)                      # (B, Cr)
    g = jax.nn.sigmoid(h @ w2.T + b2[:, 0])                   # (B, C)
    return x * g[:, :, None, None]


if __name__ == "__main__":
    key = jax.random.PRNGKey(0)

    def make_params(k, C, R):
        Cr = max(1, C // R)
        kw1, kb1, kw2, kb2 = jax.random.split(k, 4)
        w1 = jax.random.normal(kw1, (C, Cr), jnp.float32) * 0.1   # fc1.weight.T
        b1 = (jax.random.normal(kb1, (Cr,), jnp.float32) * 0.1)[None, :]
        w2 = jax.random.normal(kw2, (C, Cr), jnp.float32) * 0.1   # fc2.weight
        b2 = (jax.random.normal(kb2, (C,), jnp.float32) * 0.1)[:, None]
        return w1, b1, w2, b2

    ok = True

    # Case 1: num_channels=16, reduction_ratio=8 (Cr=2), HW a clean multiple of 128.
    kx, kp, key = jax.random.split(key, 3)
    x = jax.random.normal(kx, (2, 16, 16, 16), jnp.float32)
    params = make_params(kp, 16, 8)
    out = jax.block_until_ready(se_layer(x, *params))
    ok &= bool(jnp.allclose(out, se_layer_ref(x, *params), atol=1e-5, rtol=1e-5))
    ok &= (out.shape == x.shape)

    # Case 2: HW = 7x7 = 49 -> exercises the lane-padding (lane-dense store) path.
    kx, kp, key = jax.random.split(key, 3)
    x = jax.random.normal(kx, (2, 16, 7, 7), jnp.float32)
    params = make_params(kp, 16, 8)
    out = jax.block_until_ready(se_layer(x, *params))
    ok &= bool(jnp.allclose(out, se_layer_ref(x, *params), atol=1e-5, rtol=1e-5))

    # Case 3: force the spatially-tiled two-pass fallback with a tiny VMEM budget.
    kx, kp, key = jax.random.split(key, 3)
    x = jax.random.normal(kx, (2, 16, 16, 16), jnp.float32)
    params = make_params(kp, 16, 8)
    out = jax.block_until_ready(se_layer(x, *params, max_working_set_bytes=64 * 1024))
    ok &= bool(jnp.allclose(out, se_layer_ref(x, *params), atol=1e-5, rtol=1e-5))

    assert ok, "mismatch vs reference"
    print("KERNEL_OK")
</pallas_src>

<mosaic_0001>
module attributes {stable_mosaic.version = 11 : i64} {
  func.func @kernel(%arg0: i32, %arg1: memref<2x16x256xf32, #tpu.memory_space<vmem>>, %arg2: memref<16x2xf32, #tpu.memory_space<vmem>>, %arg3: memref<1x2xf32, #tpu.memory_space<vmem>>, %arg4: memref<16x2xf32, #tpu.memory_space<vmem>>, %arg5: memref<16x1xf32, #tpu.memory_space<vmem>>, %arg6: memref<2x16x256xf32, #tpu.memory_space<vmem>>) attributes {dimension_semantics = [#tpu.dimension_semantics<parallel>], iteration_bounds = array<i64: 1>, scalar_prefetch = 0 : i64, scratch_operands = 0 : i64, tpu.core_type = #tpu.core_type<tc>, window_params = [{transform_indices = @transform_0, window_bounds = array<i64: 2, 16, 256>}, {pipeline_mode = #tpu.pipeline_mode<synchronous>, transform_indices = @transform_1, window_bounds = array<i64: 16, 2>}, {pipeline_mode = #tpu.pipeline_mode<synchronous>, transform_indices = @transform_2, window_bounds = array<i64: 1, 2>}, {pipeline_mode = #tpu.pipeline_mode<synchronous>, transform_indices = @transform_3, window_bounds = array<i64: 16, 2>}, {pipeline_mode = #tpu.pipeline_mode<synchronous>, transform_indices = @transform_4, window_bounds = array<i64: 16, 1>}, {transform_indices = @transform_5, window_bounds = array<i64: 2, 16, 256>}]} {
    %c0 = arith.constant 0 : index
    %c0_0 = arith.constant 0 : index
    %c0_1 = arith.constant 0 : index
    %0 = vector.load %arg1[%c0, %c0_0, %c0_1] : memref<2x16x256xf32, #tpu.memory_space<vmem>>, vector<2x16x256xf32>
    %cst = arith.constant dense<0.000000e+00> : vector<2x16xf32>
    %1 = vector.multi_reduction <add>, %0, %cst [2] : vector<2x16x256xf32> to vector<2x16xf32>
    %2 = vector.shape_cast %1 : vector<2x16xf32> to vector<2x16x1xf32>
    %cst_2 = arith.constant 3.906250e-03 : f32
    %3 = vector.broadcast %cst_2 : f32 to vector<2x16x1xf32>
    %4 = arith.mulf %2, %3 : vector<2x16x1xf32>
    %c0_3 = arith.constant 0 : index
    %c0_4 = arith.constant 0 : index
    %5 = vector.load %arg2[%c0_3, %c0_4] : memref<16x2xf32, #tpu.memory_space<vmem>>, vector<16x2xf32>
    %c0_5 = arith.constant 0 : index
    %c0_6 = arith.constant 0 : index
    %6 = vector.load %arg3[%c0_5, %c0_6] : memref<1x2xf32, #tpu.memory_space<vmem>>, vector<1x2xf32>
    %c0_7 = arith.constant 0 : index
    %c0_8 = arith.constant 0 : index
    %7 = vector.load %arg4[%c0_7, %c0_8] : memref<16x2xf32, #tpu.memory_space<vmem>>, vector<16x2xf32>
    %c0_9 = arith.constant 0 : index
    %c0_10 = arith.constant 0 : index
    %8 = vector.load %arg5[%c0_9, %c0_10] : memref<16x1xf32, #tpu.memory_space<vmem>>, vector<16x1xf32>
    %9 = vector.shape_cast %5 : vector<16x2xf32> to vector<1x16x2xf32>
    %10 = vector.broadcast %4 : vector<2x16x1xf32> to vector<2x16x2xf32>
    %11 = vector.broadcast %9 : vector<1x16x2xf32> to vector<2x16x2xf32>
    %12 = arith.mulf %10, %11 : vector<2x16x2xf32>
    %cst_11 = arith.constant dense<0.000000e+00> : vector<2x2xf32>
    %13 = vector.multi_reduction <add>, %12, %cst_11 [1] : vector<2x16x2xf32> to vector<2x2xf32>
    %14 = vector.shape_cast %13 : vector<2x2xf32> to vector<2x1x2xf32>
    %15 = vector.shape_cast %6 : vector<1x2xf32> to vector<1x1x2xf32>
    %16 = vector.broadcast %15 : vector<1x1x2xf32> to vector<2x1x2xf32>
    %17 = arith.addf %14, %16 : vector<2x1x2xf32>
    %cst_12 = arith.constant 0.000000e+00 : f32
    %18 = vector.broadcast %cst_12 : f32 to vector<2x1x2xf32>
    %19 = arith.maximumf %17, %18 : vector<2x1x2xf32>
    %20 = vector.shape_cast %7 : vector<16x2xf32> to vector<1x16x2xf32>
    %21 = vector.broadcast %19 : vector<2x1x2xf32> to vector<2x16x2xf32>
    %22 = vector.broadcast %20 : vector<1x16x2xf32> to vector<2x16x2xf32>
    %23 = arith.mulf %21, %22 : vector<2x16x2xf32>
    %cst_13 = arith.constant dense<0.000000e+00> : vector<2x16xf32>
    %24 = vector.multi_reduction <add>, %23, %cst_13 [2] : vector<2x16x2xf32> to vector<2x16xf32>
    %25 = vector.shape_cast %24 : vector<2x16xf32> to vector<2x16x1xf32>
    %26 = vector.shape_cast %8 : vector<16x1xf32> to vector<1x16x1xf32>
    %27 = vector.broadcast %26 : vector<1x16x1xf32> to vector<2x16x1xf32>
    %28 = arith.addf %25, %27 : vector<2x16x1xf32>
    %29 = arith.negf %28 : vector<2x16x1xf32>
    %30 = math.exp %29 : vector<2x16x1xf32>
    %cst_14 = arith.constant 1.000000e+00 : f32
    %31 = vector.broadcast %cst_14 : f32 to vector<2x16x1xf32>
    %32 = arith.addf %31, %30 : vector<2x16x1xf32>
    %33 = arith.divf %31, %32 : vector<2x16x1xf32>
    %c0_15 = arith.constant 0 : index
    %c0_16 = arith.constant 0 : index
    %c0_17 = arith.constant 0 : index
    %34 = vector.load %arg1[%c0_15, %c0_16, %c0_17] : memref<2x16x256xf32, #tpu.memory_space<vmem>>, vector<2x16x256xf32>
    %35 = vector.broadcast %33 : vector<2x16x1xf32> to vector<2x16x256xf32>
    %36 = arith.mulf %34, %35 : vector<2x16x256xf32>
    %c0_18 = arith.constant 0 : index
    %c0_19 = arith.constant 0 : index
    %c0_20 = arith.constant 0 : index
    %37 = vector.load %arg6[%c0_18, %c0_19, %c0_20] : memref<2x16x256xf32, #tpu.memory_space<vmem>>, vector<2x16x256xf32>
    tpu.vector_store %arg6[%c0_18, %c0_19, %c0_20], %36 {strides = array<i32>} : memref<2x16x256xf32, #tpu.memory_space<vmem>>, vector<2x16x256xf32>,
    return
  }
  func.func @transform_0(%arg0: i32) -> (i32, i32, i32) {
    %c0_i32 = arith.constant 0 : i32
    %c0_i32_0 = arith.constant 0 : i32
    %c0_i32_1 = arith.constant 0 : i32
    return %arg0, %c0_i32, %c0_i32_0 : i32, i32, i32
  }
  func.func @transform_1(%arg0: i32) -> (i32, i32) {
    %c0_i32 = arith.constant 0 : i32
    %c0_i32_0 = arith.constant 0 : i32
    %c0_i32_1 = arith.constant 0 : i32
    return %c0_i32, %c0_i32_0 : i32, i32
  }
  func.func @transform_2(%arg0: i32) -> (i32, i32) {
    %c0_i32 = arith.constant 0 : i32
    %c0_i32_0 = arith.constant 0 : i32
    %c0_i32_1 = arith.constant 0 : i32
    return %c0_i32, %c0_i32_0 : i32, i32
  }
  func.func @transform_3(%arg0: i32) -> (i32, i32) {
    %c0_i32 = arith.constant 0 : i32
    %c0_i32_0 = arith.constant 0 : i32
    %c0_i32_1 = arith.constant 0 : i32
    return %c0_i32, %c0_i32_0 : i32, i32
  }
  func.func @transform_4(%arg0: i32) -> (i32, i32) {
    %c0_i32 = arith.constant 0 : i32
    %c0_i32_0 = arith.constant 0 : i32
    %c0_i32_1 = arith.constant 0 : i32
    return %c0_i32, %c0_i32_0 : i32, i32
  }
  func.func @transform_5(%arg0: i32) -> (i32, i32, i32) {
    %c0_i32 = arith.constant 0 : i32
    %c0_i32_0 = arith.constant 0 : i32
    %c0_i32_1 = arith.constant 0 : i32
    return %arg0, %c0_i32, %c0_i32_0 : i32, i32, i32
  }
}

</mosaic_0001>

<llo_original>
// kernel: tpu_custom_call.1
$region0: #{tpu_custom_call.1}
  #allocation0 [shape = 'u32[]', space=smem, size = 0x4, offset = 0x4, fixed_abs, tag = 'smem constant byte address 0x4 - core index']
  #allocation1 [shape = 'u32[144,128]{1,0:T(1,128)}', space=vmem, size = 0x12000, scoped, tag = 'internal scratch']
  %s0 = inlined_call_operand.hbm [shape: f32[2,16,256], index: 0, kind: input, shape index: {}]
  %s1 = inlined_call_operand.vmem [shape: f32[16,2], index: 1, kind: input, shape index: {}]
  %s2 = inlined_call_operand.vmem [shape: f32[1,2], index: 2, kind: input, shape index: {}]
  %s3 = inlined_call_operand.vmem [shape: f32[16,2], index: 3, kind: input, shape index: {}]
  %s4 = inlined_call_operand.vmem [shape: f32[16,1], index: 4, kind: input, shape index: {}]
  %s5 = inlined_call_operand.hbm [shape: f32[2,16,256], index: 5, kind: output, shape index: {}]
  %s6 = sld [smem:[#allocation0]]
  $region34: #{tpu_custom_call.1} parent=0
    _
  %s8 = ssub.s32 1, %s6
  %s9 = scalar_select 0, %s8, %s6
  $region1: #{tpu_custom_call.1} parent=0
    #allocation2 [shape = 'u8[32768]{0}', space=vmem, size = 0x8000, scoped, tag = 'input window, operand 0, single buffered']
    #allocation3 [shape = 's32[1]{0}', space=sflag, size = 0x4, scoped, tag = 'scoped memory for tpu_custom_call.1']
    #allocation4 [shape = 's32[1]{0}', space=sflag, size = 0x4, scoped, tag = 'scoped memory for tpu_custom_call.1']
    #allocation5 [shape = 'u8[32768]{0}', space=vmem, size = 0x8000, scoped, tag = 'output window, operand 0, single buffered']
    %10 = vsyncpa [#allocation3], 0
    %11 = vsyncpa [#allocation4], 0
    // Predicated region
    $region2: #{tpu_custom_call.1} parent=1 // pred_check
      _
    $region3: #{tpu_custom_call.1} parent=1 // pred_check_branch
      %13 = sbr.rel (0) target = $region5
    $region4: #{tpu_custom_call.1} parent=1 // pred_region
      %s15 = ssub.s32 1024, 1024
      %16 = vsyncadd [#allocation3], %s15
      %s17 = sshll.u32 [#allocation2], 4
      %s18 = int_to_ptr.vmem [resolvable:$true] %s17
      %23 = dma.hbm_to_vmem [thread:$0]  %s0, 1024, %s18, [#allocation3], 256, 256, 16
    $region5: #{tpu_custom_call.1} parent=1 // pred_fallthru
      _
    // Predicated region
    $region6: #{tpu_custom_call.1} parent=1 // pred_check
      _
    $region7: #{tpu_custom_call.1} parent=1 // pred_check_branch
      %25 = sbr.rel (0) target = $region9
    $region8: #{tpu_custom_call.1} parent=1 // pred_region
      _
    $region9: #{tpu_custom_call.1} parent=1 // pred_fallthru
      _
    // Predicated region
    $region10: #{tpu_custom_call.1} parent=1 // pred_check
      _
    $region11: #{tpu_custom_call.1} parent=1 // pred_check_branch
      %27 = sbr.rel (0) target = $region13
    $region12: #{tpu_custom_call.1} parent=1 // pred_region
      _
    $region13: #{tpu_custom_call.1} parent=1 // pred_fallthru
      _
    // Predicated region
    $region14: #{tpu_custom_call.1} parent=1 // pred_check
      _
    $region15: #{tpu_custom_call.1} parent=1 // pred_check_branch
      %29 = sbr.rel (0) target = $region17
    $region16: #{tpu_custom_call.1} parent=1 // pred_region
      _
    $region17: #{tpu_custom_call.1} parent=1 // pred_fallthru
      _
    // Predicated region
    $region18: #{tpu_custom_call.1} parent=1 // pred_check
      _
    $region19: #{tpu_custom_call.1} parent=1 // pred_check_branch
      %31 = sbr.rel (0) target = $region21
    $region20: #{tpu_custom_call.1} parent=1 // pred_region
      _
    $region21: #{tpu_custom_call.1} parent=1 // pred_fallthru
      _
    // Predicated region
    $region22: #{tpu_custom_call.1} parent=1 // pred_check
      _
    $region23: #{tpu_custom_call.1} parent=1 // pred_check_branch
      %33 = sbr.rel (0) target = $region25
    $region24: #{tpu_custom_call.1} parent=1 // pred_region
      %34 = dma.done [#allocation3], 1024
    $region25: #{tpu_custom_call.1} parent=1 // pred_fallthru
      _
    %v35 = vld [vmem:[#allocation2] sm:$0xff]
    %v36 = vld [vmem:[#allocation2 + $0x8] sm:$0xff]
    %v37 = vld [vmem:[#allocation2 + $0x10] sm:$0xff]
    %v38 = vld [vmem:[#allocation2 + $0x18] sm:$0xff]
    %v39 = vld [vmem:[#allocation2 + $0x20] sm:$0xff]
    %v40 = vld [vmem:[#allocation2 + $0x28] sm:$0xff]
    %v41 = vld [vmem:[#allocation2 + $0x30] sm:$0xff]
    %v42 = vld [vmem:[#allocation2 + $0x38] sm:$0xff]
    %v43 = vadd.f32 %v35, %v36
    %44 = vadd.xlane.f32.xlu0 %v43
    %v45 = vpop.xlane.xlu0 %44
    %v46 = vadd.f32 %v37, %v38
    %47 = vadd.xlane.f32.xlu0 %v46
    %v48 = vpop.xlane.xlu0 %47
    %v49 = vadd.f32 %v39, %v40
    %50 = vadd.xlane.f32.xlu0 %v49
    %v51 = vpop.xlane.xlu0 %50
    %v52 = vadd.f32 %v41, %v42
    %53 = vadd.xlane.f32.xlu0 %v52
    %v54 = vpop.xlane.xlu0 %53
    %v55 = vmul.f32 %v45, 0.00390625
    %v56 = vmul.f32 %v48, 0.00390625
    %v57 = vmul.f32 %v51, 0.00390625
    %v58 = vmul.f32 %v54, 0.00390625
    %v59 = vld [vmem:[%s1] sm:$0xff]
    %v60 = vld [vmem:[%s1 + $0x8] sm:$0xff]
    %v61 = vld [vmem:[%s2] sm:$0x1]
    %v62 = vld [vmem:[%s3] sm:$0xff]
    %v63 = vld [vmem:[%s3 + $0x8] sm:$0xff]
    %v64 = vld [vmem:[%s4] sm:$0xff]
    %v65 = vld [vmem:[%s4 + $0x8] sm:$0xff]
    %v66 = vmul.f32 %v55, %v59
    %v67 = vmul.f32 %v56, %v60
    %v68 = vmul.f32 %v57, %v59
    %v69 = vmul.f32 %v58, %v60
    %vm70 = vcmask 15360
    %v71 = vsel %vm70, %v66, 0.0
    %v72 = vsel %vm70, %v67, 0.0
    %v73 = vadd.f32 %v71, %v72
    %v74 = vrot.slane %v73, 4
    %v75 = vadd.f32 %v73, %v74
    %v76 = vrot.slane %v75, 2
    %v77 = vadd.f32 %v75, %v76
    %v78 = vrot.slane %v77, 1
    %v79 = vadd.f32 %v77, %v78
    %v80 = vsel %vm70, %v68, 0.0
    %v81 = vsel %vm70, %v69, 0.0
    %v82 = vadd.f32 %v80, %v81
    %v83 = vrot.slane %v82, 4
    %v84 = vadd.f32 %v82, %v83
    %v85 = vrot.slane %v84, 2
    %v86 = vadd.f32 %v84, %v85
    %v87 = vrot.slane %v86, 1
    %v88 = vadd.f32 %v86, %v87
    %v89 = vadd.f32 %v79, %v61
    %v90 = vadd.f32 %v88, %v61
    %v91 = vmax.f32 %v89, 0.0
    %v92 = vmax.f32 %v90, 0.0
    %v93 = vlaneseq
    %v94 = vshrl.u32 %v93, 7
    %v95 = vsub.s32 0, %v94
    %v96 = vrot.slane %v91, %v95
    %v97 = vlaneseq
    %v98 = vshrl.u32 %v97, 7
    %v99 = vsub.s32 0, %v98
    %v100 = vrot.slane %v92, %v99
    %v101 = vmul.f32 %v96, %v62
    %v102 = vmul.f32 %v96, %v63
    %v103 = vmul.f32 %v100, %v62
    %v104 = vmul.f32 %v100, %v63
    %v105 = vsel %vm70, %v101, 0.0
    %106 = vadd.xlane.f32.xlu0 %v105
    %v107 = vpop.xlane.xlu0 %106
    %v108 = vsel %vm70, %v102, 0.0
    %109 = vadd.xlane.f32.xlu0 %v108
    %v110 = vpop.xlane.xlu0 %109
    %v111 = vsel %vm70, %v103, 0.0
    %112 = vadd.xlane.f32.xlu0 %v111
    %v113 = vpop.xlane.xlu0 %112
    %v114 = vsel %vm70, %v104, 0.0
    %115 = vadd.xlane.f32.xlu0 %v114
    %v116 = vpop.xlane.xlu0 %115
    %v117 = vadd.f32 %v107, %v64
    %v118 = vadd.f32 %v110, %v65
    %v119 = vadd.f32 %v113, %v64
    %v120 = vadd.f32 %v116, %v65
    %v121 = vxor.u32 %v117, 2147483648
    %v122 = vxor.u32 %v118, 2147483648
    %v123 = vxor.u32 %v119, 2147483648
    %v124 = vxor.u32 %v120, 2147483648
    %v125 = vmul.f32 %v121, 1.442695
    %v126 = vpow.pop %v125
    %v127 = vmul.f32 %v122, 1.442695
    %v128 = vpow.pop %v127
    %v129 = vmul.f32 %v123, 1.442695
    %v130 = vpow.pop %v129
    %v131 = vmul.f32 %v124, 1.442695
    %v132 = vpow.pop %v131
    %v133 = vadd.f32 %v126, 1.0
    %v134 = vadd.f32 %v128, 1.0
    %v135 = vadd.f32 %v130, 1.0
    %v136 = vadd.f32 %v132, 1.0
    %v137 = vrcp.pop %v133
    %v138 = vmul.f32 1.0, %v137
    %v139 = vrcp.pop %v134
    %v140 = vmul.f32 1.0, %v139
    %v141 = vrcp.pop %v135
    %v142 = vmul.f32 1.0, %v141
    %v143 = vrcp.pop %v136
    %v144 = vmul.f32 1.0, %v143
    %146 = vset.pattern.permute.xlu0 0
    %147 = vperm.xlu0 %146, %v138
    %v148 = vpop.permute.xlu0 %147
    %151 = vset.pattern.permute.xlu0 0
    %152 = vperm.xlu0 %151, %v140
    %v153 = vpop.permute.xlu0 %152
    %156 = vset.pattern.permute.xlu0 0
    %157 = vperm.xlu0 %156, %v142
    %v158 = vpop.permute.xlu0 %157
    %161 = vset.pattern.permute.xlu0 0
    %162 = vperm.xlu0 %161, %v144
    %v163 = vpop.permute.xlu0 %162
    %v165 = vmul.f32 %v35, %v148
    %v166 = vmul.f32 %v36, %v148
    %v167 = vmul.f32 %v37, %v153
    %v168 = vmul.f32 %v38, %v153
    %v169 = vmul.f32 %v39, %v158
    %v170 = vmul.f32 %v40, %v158
    %v171 = vmul.f32 %v41, %v163
    %v172 = vmul.f32 %v42, %v163
    %173 = vst [vmem:[#allocation5] sm:$0xff] %v165
    %174 = vst [vmem:[#allocation5 + $0x8] sm:$0xff] %v166
    %175 = vst [vmem:[#allocation5 + $0x10] sm:$0xff] %v167
    %176 = vst [vmem:[#allocation5 + $0x18] sm:$0xff] %v168
    %177 = vst [vmem:[#allocation5 + $0x20] sm:$0xff] %v169
    %178 = vst [vmem:[#allocation5 + $0x28] sm:$0xff] %v170
    %179 = vst [vmem:[#allocation5 + $0x30] sm:$0xff] %v171
    %180 = vst [vmem:[#allocation5 + $0x38] sm:$0xff] %v172
    // Predicated region
    $region26: #{tpu_custom_call.1} parent=1 // pred_check
      _
    $region27: #{tpu_custom_call.1} parent=1 // pred_check_branch
      %182 = sbr.rel (0) target = $region29
    $region28: #{tpu_custom_call.1} parent=1 // pred_region
      %s184 = ssub.s32 1024, 1024
      %185 = vsyncadd [#allocation4], %s184
      %s186 = sshll.u32 [#allocation5], 4
      %s187 = int_to_ptr.vmem [resolvable:$true] %s186
      %192 = dma.vmem_to_hbm [thread:$0]  %s187, 1024, %s5, [#allocation4], 256, 256, 16
    $region29: #{tpu_custom_call.1} parent=1 // pred_fallthru
      _
    // Predicated region
    $region30: #{tpu_custom_call.1} parent=1 // pred_check
      _
    $region31: #{tpu_custom_call.1} parent=1 // pred_check_branch
      %194 = sbr.rel (0) target = $region33
    $region32: #{tpu_custom_call.1} parent=1 // pred_region
      %195 = dma.done [#allocation4], 1024
    $region33: #{tpu_custom_call.1} parent=1 // pred_fallthru
      _
    %196 = vsyncpa [#allocation3], 1
    %197 = vsyncpa [#allocation4], 1

</llo_original>
